<compile_context>
chip_gen: v5e
topology: v5e:2x2
jax: 0.10.0
libtpu: 0.0.40
codegen_flags: <defaults>
</compile_context>

<pallas_src>
import jax
import jax.numpy as jnp
from jax.experimental import pallas as pl
from jax.experimental.pallas import tpu as pltpu


def _round_up(n, m):
    return ((n + m - 1) // m) * m


def decoder_kernel(x_ref, w1_ref, b1_ref, w2_ref, b2_ref, o_ref):
    # x_ref : (block_m, latent_dim)       -- compute dtype
    # w1_ref: (latent_dim, hid_p)         -- W1 @ softplus(W_mix), pre-transposed
    # b1_ref: (1, hid_p)                  -- fp32
    # w2_ref: (hid_p, observed_dim)       -- pre-transposed (no column padding)
    # b2_ref: (1, observed_dim)           -- fp32
    # o_ref : (block_m, observed_dim)     -- logical-width output block
    h = jnp.dot(x_ref[...], w1_ref[...], preferred_element_type=jnp.float32)
    h = jnp.maximum(h + b1_ref[...], 0.0)            # fp32 epilogue (v5e-safe)
    out = jnp.dot(h.astype(w2_ref.dtype), w2_ref[...],
                  preferred_element_type=jnp.float32)
    o_ref[...] = (out + b2_ref[...]).astype(o_ref.dtype)


def decoder_forward(x, w_mix, w1, b1, w2, b2, *, block_m=None,
                    compute_dtype=jnp.bfloat16, out_dtype=None):
    B, latent_dim = x.shape
    observed_dim = w_mix.shape[0]
    hidden = w1.shape[0]
    out_dtype = x.dtype if out_dtype is None else out_dtype

    # ---- fold LinearPositive into the first MLP layer (wrapper-side, fp32) ----
    # relu((x @ softplus(W_mix).T) @ W1.T + b1) == relu(x @ (W1 @ softplus(W_mix)).T + b1)
    w_pos = jax.nn.softplus(w_mix.astype(jnp.float32))            # (obs, lat)
    w1_eff_t = (w1.astype(jnp.float32) @ w_pos).T                 # (lat, hidden)
    w2_t = w2.astype(jnp.float32).T                               # (hidden, obs)

    # ---- pad hidden (VMEM-internal only) to a lane multiple -------------------
    lane = 256 if hidden > 128 else 128
    hid_p = _round_up(hidden, lane)
    w1_eff_t = jnp.pad(w1_eff_t, ((0, 0), (0, hid_p - hidden))).astype(compute_dtype)
    b1_p = jnp.pad(b1.reshape(1, -1).astype(jnp.float32),
                   ((0, 0), (0, hid_p - hidden)))
    w2_t = jnp.pad(w2_t, ((0, hid_p - hidden), (0, 0))).astype(compute_dtype)
    b2_p = b2.reshape(1, -1).astype(jnp.float32)

    # ---- batch tiling: >=2 grid steps when possible, <=512 rows per tile ------
    if block_m is None:
        n_tiles = max(2, -(-B // 512))                 # at least 2 (v7x 2 TCs)
        block_m = _round_up(max(1, -(-B // n_tiles)), 8)
    block_m = max(8, _round_up(block_m, 8))
    B_p = _round_up(B, block_m)
    x_p = x.astype(compute_dtype)
    if B_p != B:
        x_p = jnp.pad(x_p, ((0, B_p - B), (0, 0)))
    grid = (B_p // block_m,)

    full = lambda i: (0, 0)  # weights / biases resident across the batch grid

    # ---- explicit VMEM budget (capped at v7x's 64 MiB physical) ---------------
    cbytes = jnp.dtype(compute_dtype).itemsize
    obytes = jnp.dtype(out_dtype).itemsize
    vmem_est = (2 * block_m * latent_dim * cbytes                     # x (2x buf)
                + 2 * block_m * observed_dim * obytes                 # out (2x buf)
                + 2 * (latent_dim * hid_p + hid_p * observed_dim) * cbytes  # weights
                + 2 * (hid_p + observed_dim) * 4                      # biases
                + block_m * (hid_p + observed_dim) * 4)               # fp32 interm.
    vmem_limit = int(min(64 * 2**20, max(32 * 2**20, 2 * vmem_est)))

    out = pl.pallas_call(
        decoder_kernel,
        out_shape=jax.ShapeDtypeStruct((B_p, observed_dim), out_dtype),
        grid_spec=pltpu.PrefetchScalarGridSpec(
            num_scalar_prefetch=0,
            grid=grid,
            in_specs=[
                pl.BlockSpec((block_m, latent_dim), lambda i: (i, 0)),  # x tile
                pl.BlockSpec((latent_dim, hid_p), full),                # W1_eff^T
                pl.BlockSpec((1, hid_p), full),                         # b1
                pl.BlockSpec((hid_p, observed_dim), full),              # W2^T
                pl.BlockSpec((1, observed_dim), full),                  # b2
            ],
            out_specs=pl.BlockSpec((block_m, observed_dim), lambda i: (i, 0)),
        ),
        compiler_params=pltpu.CompilerParams(
            dimension_semantics=("parallel",),
            vmem_limit_bytes=vmem_limit),
    )(x_p, w1_eff_t, b1_p, w2_t, b2_p)

    if B_p != B:
        out = out[:B]        # row-only slice, only when B needed padding
    return out


def reference_forward(x, w_mix, w1, b1, w2, b2):
    y = x @ jax.nn.softplus(w_mix).T
    h = jnp.maximum(y @ w1.T + b1.reshape(1, -1), 0.0)
    return h @ w2.T + b2.reshape(1, -1)


if __name__ == "__main__":
    # Small shapes consistent with the module's forward:
    #   latent_dim -> observed_dim -> (MLP hidden) -> observed_dim
    B = 8
    latent_dim = 16
    observed_dim = 32
    hidden = 64

    key = jax.random.PRNGKey(0)
    k_x, k_w1, k_b1, k_w2, k_b2, k_x2 = jax.random.split(key, 6)

    x = jax.random.normal(k_x, (B, latent_dim), dtype=jnp.float32)

    # LinearPositive raw weight initialized to eye(observed_dim, latent_dim)
    w_mix = jnp.eye(observed_dim, latent_dim, dtype=jnp.float32)

    # Deterministic MLP parameters
    w1 = 0.1 * jax.random.normal(k_w1, (hidden, observed_dim), dtype=jnp.float32)
    b1 = 0.1 * jax.random.normal(k_b1, (1, hidden), dtype=jnp.float32)
    w2 = 0.1 * jax.random.normal(k_w2, (observed_dim, hidden), dtype=jnp.float32)
    b2 = 0.1 * jax.random.normal(k_b2, (1, observed_dim), dtype=jnp.float32)

    ref = reference_forward(x, w_mix, w1, b1, w2, b2)

    # 1) Strict fp32 check.
    out_f32 = jax.block_until_ready(
        decoder_forward(x, w_mix, w1, b1, w2, b2, compute_dtype=jnp.float32))
    assert out_f32.shape == (B, observed_dim)
    assert jnp.allclose(out_f32, ref, atol=1e-4, rtol=1e-4), "mismatch (fp32)"

    # 2) Production default: bf16 MXU operands, fp32 accumulation, fp32 output.
    out_bf16 = jax.block_until_ready(decoder_forward(x, w_mix, w1, b1, w2, b2))
    assert out_bf16.shape == (B, observed_dim)
    assert out_bf16.dtype == jnp.float32
    assert jnp.allclose(out_bf16, ref, atol=5e-2, rtol=5e-2), "mismatch (bf16)"

    # 3) Ragged batch, multi-step grid (explicit block_m -> grid=(3,), pad+slice rows).
    B2 = 40
    x2 = jax.random.normal(k_x2, (B2, latent_dim), dtype=jnp.float32)
    ref2 = reference_forward(x2, w_mix, w1, b1, w2, b2)
    out2 = jax.block_until_ready(
        decoder_forward(x2, w_mix, w1, b1, w2, b2,
                        compute_dtype=jnp.float32, block_m=16))
    assert out2.shape == (B2, observed_dim)
    assert jnp.allclose(out2, ref2, atol=1e-4, rtol=1e-4), "mismatch (ragged B)"

    # 4) Default tiling on the same ragged batch (auto >=2 grid steps).
    out3 = jax.block_until_ready(
        decoder_forward(x2, w_mix, w1, b1, w2, b2, compute_dtype=jnp.float32))
    assert out3.shape == (B2, observed_dim)
    assert jnp.allclose(out3, ref2, atol=1e-4, rtol=1e-4), "mismatch (auto tiling)"

    print("KERNEL_OK")
</pallas_src>

<mosaic_0001>
module attributes {stable_mosaic.version = 11 : i64} {
  func.func @decoder_kernel(%arg0: i32, %arg1: memref<8x16xf32, #tpu.memory_space<vmem>>, %arg2: memref<16x128xf32, #tpu.memory_space<vmem>>, %arg3: memref<1x128xf32, #tpu.memory_space<vmem>>, %arg4: memref<128x32xf32, #tpu.memory_space<vmem>>, %arg5: memref<1x32xf32, #tpu.memory_space<vmem>>, %arg6: memref<8x32xf32, #tpu.memory_space<vmem>>) attributes {dimension_semantics = [#tpu.dimension_semantics<parallel>], iteration_bounds = array<i64: 1>, scalar_prefetch = 0 : i64, scratch_operands = 0 : i64, tpu.core_type = #tpu.core_type<tc>, window_params = [{transform_indices = @transform_0, window_bounds = array<i64: 8, 16>}, {pipeline_mode = #tpu.pipeline_mode<synchronous>, transform_indices = @transform_1, window_bounds = array<i64: 16, 128>}, {pipeline_mode = #tpu.pipeline_mode<synchronous>, transform_indices = @transform_2, window_bounds = array<i64: 1, 128>}, {pipeline_mode = #tpu.pipeline_mode<synchronous>, transform_indices = @transform_3, window_bounds = array<i64: 128, 32>}, {pipeline_mode = #tpu.pipeline_mode<synchronous>, transform_indices = @transform_4, window_bounds = array<i64: 1, 32>}, {transform_indices = @transform_5, window_bounds = array<i64: 8, 32>}]} {
    %c0 = arith.constant 0 : index
    %c0_0 = arith.constant 0 : index
    %0 = vector.load %arg1[%c0, %c0_0] : memref<8x16xf32, #tpu.memory_space<vmem>>, vector<8x16xf32>
    %c0_1 = arith.constant 0 : index
    %c0_2 = arith.constant 0 : index
    %1 = vector.load %arg2[%c0_1, %c0_2] : memref<16x128xf32, #tpu.memory_space<vmem>>, vector<16x128xf32>
    %cst = arith.constant dense<0.000000e+00> : vector<8x128xf32>
    %2 = tpu.matmul %0, %1, %cst {dimension_numbers = #tpu.dot_dimension_numbers<[1], [0], [0], [1], [0, 0, 1, 1], [], []>} : vector<8x16xf32>, vector<16x128xf32>, vector<8x128xf32> -> vector<8x128xf32>
    %c0_3 = arith.constant 0 : index
    %c0_4 = arith.constant 0 : index
    %3 = vector.load %arg3[%c0_3, %c0_4] : memref<1x128xf32, #tpu.memory_space<vmem>>, vector<1x128xf32>
    %4 = vector.broadcast %3 : vector<1x128xf32> to vector<8x128xf32>
    %5 = arith.addf %2, %4 : vector<8x128xf32>
    %cst_5 = arith.constant 0.000000e+00 : f32
    %6 = vector.broadcast %cst_5 : f32 to vector<8x128xf32>
    %7 = arith.maximumf %5, %6 : vector<8x128xf32>
    %c0_6 = arith.constant 0 : index
    %c0_7 = arith.constant 0 : index
    %8 = vector.load %arg4[%c0_6, %c0_7] : memref<128x32xf32, #tpu.memory_space<vmem>>, vector<128x32xf32>
    %cst_8 = arith.constant dense<0.000000e+00> : vector<8x32xf32>
    %9 = tpu.matmul %7, %8, %cst_8 {dimension_numbers = #tpu.dot_dimension_numbers<[1], [0], [0], [1], [0, 0, 1, 1], [], []>} : vector<8x128xf32>, vector<128x32xf32>, vector<8x32xf32> -> vector<8x32xf32>
    %c0_9 = arith.constant 0 : index
    %c0_10 = arith.constant 0 : index
    %10 = vector.load %arg5[%c0_9, %c0_10] : memref<1x32xf32, #tpu.memory_space<vmem>>, vector<1x32xf32>
    %11 = vector.broadcast %10 : vector<1x32xf32> to vector<8x32xf32>
    %12 = arith.addf %9, %11 : vector<8x32xf32>
    %c0_11 = arith.constant 0 : index
    %c0_12 = arith.constant 0 : index
    %13 = vector.load %arg6[%c0_11, %c0_12] : memref<8x32xf32, #tpu.memory_space<vmem>>, vector<8x32xf32>
    tpu.vector_store %arg6[%c0_11, %c0_12], %12 {strides = array<i32>} : memref<8x32xf32, #tpu.memory_space<vmem>>, vector<8x32xf32>,
    return
  }
  func.func @transform_0(%arg0: i32) -> (i32, i32) {
    %c0_i32 = arith.constant 0 : i32
    %c0_i32_0 = arith.constant 0 : i32
    return %arg0, %c0_i32 : i32, i32
  }
  func.func @transform_1(%arg0: i32) -> (i32, i32) {
    %c0_i32 = arith.constant 0 : i32
    %c0_i32_0 = arith.constant 0 : i32
    %c0_i32_1 = arith.constant 0 : i32
    return %c0_i32, %c0_i32_0 : i32, i32
  }
  func.func @transform_2(%arg0: i32) -> (i32, i32) {
    %c0_i32 = arith.constant 0 : i32
    %c0_i32_0 = arith.constant 0 : i32
    %c0_i32_1 = arith.constant 0 : i32
    return %c0_i32, %c0_i32_0 : i32, i32
  }
  func.func @transform_3(%arg0: i32) -> (i32, i32) {
    %c0_i32 = arith.constant 0 : i32
    %c0_i32_0 = arith.constant 0 : i32
    %c0_i32_1 = arith.constant 0 : i32
    return %c0_i32, %c0_i32_0 : i32, i32
  }
  func.func @transform_4(%arg0: i32) -> (i32, i32) {
    %c0_i32 = arith.constant 0 : i32
    %c0_i32_0 = arith.constant 0 : i32
    %c0_i32_1 = arith.constant 0 : i32
    return %c0_i32, %c0_i32_0 : i32, i32
  }
  func.func @transform_5(%arg0: i32) -> (i32, i32) {
    %c0_i32 = arith.constant 0 : i32
    %c0_i32_0 = arith.constant 0 : i32
    return %arg0, %c0_i32 : i32, i32
  }
}

</mosaic_0001>

<llo_original>
// kernel: tpu_custom_call.1
$region0: #{tpu_custom_call.1}
  #allocation0 [shape = 'u32[]', space=smem, size = 0x4, offset = 0x4, fixed_abs, tag = 'smem constant byte address 0x4 - core index']
  #allocation1 [shape = 'u32[72,128]{1,0:T(1,128)}', space=vmem, size = 0x9000, scoped, tag = 'internal scratch']
  %s0 = inlined_call_operand.vmem [shape: f32[8,16], index: 0, kind: input, shape index: {}]
  %s1 = inlined_call_operand.vmem [shape: f32[16,128], index: 1, kind: input, shape index: {}]
  %s2 = inlined_call_operand.vmem [shape: f32[1,128], index: 2, kind: input, shape index: {}]
  %s3 = inlined_call_operand.vmem [shape: f32[128,32], index: 3, kind: input, shape index: {}]
  %s4 = inlined_call_operand.vmem [shape: f32[1,32], index: 4, kind: input, shape index: {}]
  %s5 = inlined_call_operand.hbm [shape: f32[8,32], index: 5, kind: output, shape index: {}]
  %s6 = sld [smem:[#allocation0]]
  $region30: #{tpu_custom_call.1} parent=0
    _
  %s8 = ssub.s32 1, %s6
  %s9 = scalar_select 0, %s8, %s6
  $region1: #{tpu_custom_call.1} parent=0
    #allocation2 [shape = 'u8[4096]{0}', space=vmem, size = 0x1000, scoped, tag = 'output window, operand 0, single buffered']
    #allocation3 [shape = 's32[1]{0}', space=sflag, size = 0x4, scoped, tag = 'scoped memory for tpu_custom_call.1']
    %10 = vsyncpa [#allocation3], 0
    // Predicated region
    $region2: #{tpu_custom_call.1} parent=1 // pred_check
      _
    $region3: #{tpu_custom_call.1} parent=1 // pred_check_branch
      %12 = sbr.rel (0) target = $region5
    $region4: #{tpu_custom_call.1} parent=1 // pred_region
      _
    $region5: #{tpu_custom_call.1} parent=1 // pred_fallthru
      _
    // Predicated region
    $region6: #{tpu_custom_call.1} parent=1 // pred_check
      _
    $region7: #{tpu_custom_call.1} parent=1 // pred_check_branch
      %14 = sbr.rel (0) target = $region9
    $region8: #{tpu_custom_call.1} parent=1 // pred_region
      _
    $region9: #{tpu_custom_call.1} parent=1 // pred_fallthru
      _
    // Predicated region
    $region10: #{tpu_custom_call.1} parent=1 // pred_check
      _
    $region11: #{tpu_custom_call.1} parent=1 // pred_check_branch
      %16 = sbr.rel (0) target = $region13
    $region12: #{tpu_custom_call.1} parent=1 // pred_region
      _
    $region13: #{tpu_custom_call.1} parent=1 // pred_fallthru
      _
    // Predicated region
    $region14: #{tpu_custom_call.1} parent=1 // pred_check
      _
    $region15: #{tpu_custom_call.1} parent=1 // pred_check_branch
      %18 = sbr.rel (0) target = $region17
    $region16: #{tpu_custom_call.1} parent=1 // pred_region
      _
    $region17: #{tpu_custom_call.1} parent=1 // pred_fallthru
      _
    // Predicated region
    $region18: #{tpu_custom_call.1} parent=1 // pred_check
      _
    $region19: #{tpu_custom_call.1} parent=1 // pred_check_branch
      %20 = sbr.rel (0) target = $region21
    $region20: #{tpu_custom_call.1} parent=1 // pred_region
      _
    $region21: #{tpu_custom_call.1} parent=1 // pred_fallthru
      _
    %v21 = vld [vmem:[%s0] sm:$0xff]
    %v22 = vld [vmem:[%s1] sm:$0xff]
    %v23 = vld [vmem:[%s1 + $0x8] sm:$0xff]
    %v24 = vld [vmem:[%s2] sm:$0x1]
    %v26 = vperm.slane %v24, 0
    %vm28 = vcmask 130048
    %v30 = vsel %vm28, %v21, 0
    %32 = vmatpush.msra.mxu0 0.0
    %33 = vmatpush.msra.mxu0 0.0
    %34 = vmatpush.msra.mxu0 0.0
    %35 = vmatpush.msra.mxu0 0.0
    %36 = vmatpush.msra.mxu0 0.0
    %37 = vmatpush.msra.mxu0 0.0
    %38 = vmatpush.msra.mxu0 0.0
    %39 = vmatpush.msra.mxu0 0.0
    %40 = vmatpush.msra.mxu0 0.0
    %41 = vmatpush.msra.mxu0 0.0
    %42 = vmatpush.msra.mxu0 0.0
    %43 = vmatpush.msra.mxu0 0.0
    %44 = vmatpush.msra.mxu0 0.0
    %45 = vmatpush.msra.mxu0 0.0
    %46 = vmatpush.msra.mxu0 %v23
    %47 = vmatpush.msra.mxu0 %v22
    %48 = vmatmul.f32.gmra.mxu0 %v30
    %v49 = vpop.f32.mrf.mxu0
    %v50 = vadd.f32 %v26, %v49
    %51 = vdwg.mxu0
    %v52 = vmax.f32 %v50, 0.0
    %v53 = vld [vmem:[%s3] sm:$0xff]
    %v54 = vld [vmem:[%s3 + $0x8] sm:$0xff]
    %v55 = vld [vmem:[%s3 + $0x10] sm:$0xff]
    %v56 = vld [vmem:[%s3 + $0x18] sm:$0xff]
    %v57 = vld [vmem:[%s3 + $0x20] sm:$0xff]
    %v58 = vld [vmem:[%s3 + $0x28] sm:$0xff]
    %v59 = vld [vmem:[%s3 + $0x30] sm:$0xff]
    %v60 = vld [vmem:[%s3 + $0x38] sm:$0xff]
    %v61 = vld [vmem:[%s3 + $0x40] sm:$0xff]
    %v62 = vld [vmem:[%s3 + $0x48] sm:$0xff]
    %v63 = vld [vmem:[%s3 + $0x50] sm:$0xff]
    %v64 = vld [vmem:[%s3 + $0x58] sm:$0xff]
    %v65 = vld [vmem:[%s3 + $0x60] sm:$0xff]
    %v66 = vld [vmem:[%s3 + $0x68] sm:$0xff]
    %v67 = vld [vmem:[%s3 + $0x70] sm:$0xff]
    %v68 = vld [vmem:[%s3 + $0x78] sm:$0xff]
    %v69 = vld [vmem:[%s4] sm:$0x1]
    %v71 = vperm.slane %v69, 0
    %73 = vmatpush.msra.mxu0 %v68
    %74 = vmatpush.msra.mxu0 %v67
    %75 = vmatpush.msra.mxu0 %v66
    %76 = vmatpush.msra.mxu0 %v65
    %77 = vmatpush.msra.mxu0 %v64
    %78 = vmatpush.msra.mxu0 %v63
    %79 = vmatpush.msra.mxu0 %v62
    %80 = vmatpush.msra.mxu0 %v61
    %81 = vmatpush.msra.mxu0 %v60
    %82 = vmatpush.msra.mxu0 %v59
    %83 = vmatpush.msra.mxu0 %v58
    %84 = vmatpush.msra.mxu0 %v57
    %85 = vmatpush.msra.mxu0 %v56
    %86 = vmatpush.msra.mxu0 %v55
    %87 = vmatpush.msra.mxu0 %v54
    %88 = vmatpush.msra.mxu0 %v53
    %89 = vmatmul.f32.gmra.mxu0 %v52
    %v90 = vpop.f32.mrf.mxu0
    %v91 = vadd.f32 %v71, %v90
    %92 = vdwg.mxu0
    %vm93 = vcmask 261120
    %94 = vst.msk [vmem:[#allocation2] sm:$0xff] %vm93, %v91
    // Predicated region
    $region22: #{tpu_custom_call.1} parent=1 // pred_check
      _
    $region23: #{tpu_custom_call.1} parent=1 // pred_check_branch
      %96 = sbr.rel (0) target = $region25
    $region24: #{tpu_custom_call.1} parent=1 // pred_region
      %98 = vsyncadd [#allocation3], 0
      %s100 = sshll.u32 [#allocation2], 4
      %s101 = int_to_ptr.vmem [resolvable:$true] %s100
      %s102 = sshll.u32 %s5, 4
      %s103 = int_to_ptr.hbm [resolvable:$true] %s102
      %105 = dma.vmem_to_hbm [thread:$0]  %s101, 128, %s103, [#allocation3]
    $region25: #{tpu_custom_call.1} parent=1 // pred_fallthru
      _
    // Predicated region
    $region26: #{tpu_custom_call.1} parent=1 // pred_check
      _
    $region27: #{tpu_custom_call.1} parent=1 // pred_check_branch
      %107 = sbr.rel (0) target = $region29
    $region28: #{tpu_custom_call.1} parent=1 // pred_region
      %109 = dma.done [#allocation3], 128
    $region29: #{tpu_custom_call.1} parent=1 // pred_fallthru
      _
    %110 = vsyncpa [#allocation3], 1

</llo_original>
